<compile_context>
chip_gen: v6e
topology: v6e:2x2x1
jax: 0.10.0
libtpu: 0.0.40
codegen_flags: <defaults>
</compile_context>

<pallas_src>
import functools

import numpy as np

import jax
import jax.numpy as jnp
from jax import lax
from jax.experimental import pallas as pl
from jax.experimental.pallas import tpu as pltpu


# --------------------------------------------------------------------------
# VMEM budgeting (generation aware).
# --------------------------------------------------------------------------
@functools.lru_cache(maxsize=None)
def _vmem_capacity_bytes():
    try:
        return int(pltpu.get_tpu_info().vmem_capacity_bytes)
    except Exception:
        return 64 * 1024 * 1024  # v7x-safe conservative default


def _budgets(input_block_budget):
    cap = _vmem_capacity_bytes()
    # Explicit scoped-VMEM limit: 48 MiB on 64-MiB parts (v7x), up to 96 MiB
    # on 128-MiB parts (v5e/v6e); always leave headroom for Mosaic scratch.
    vmem_limit = int(min(96 << 20, max(32 << 20, (cap * 3) // 4)))
    budget = input_block_budget or int(min(16 << 20, vmem_limit // 4))
    return budget, vmem_limit


def _sublane_multiple(itemsize):
    return {1: 32, 2: 16, 4: 8}.get(itemsize, 8)


# --------------------------------------------------------------------------
# Kernel 1: transpose-free path. Block (1, R, TQ); reduce over the sublane
# (R) axis with XLU max/min reduces; all loads/stores are full dense vregs.
# --------------------------------------------------------------------------
def _argmax_sublane_kernel(x_ref, o_ref):
    x = x_ref[0]                                   # (R, TQ) dense load
    r = x.shape[0]
    idx = lax.broadcasted_iota(jnp.int32, x.shape, 0)
    big = jnp.int32(r)

    if jnp.issubdtype(x_ref.dtype, jnp.floating):
        is_nan = x != x
        xc = jnp.where(is_nan, jnp.array(-jnp.inf, x.dtype), x)
    else:
        is_nan = None
        xc = x

    m = jnp.max(xc, axis=0, keepdims=True)                         # XLU
    best = jnp.min(jnp.where(xc == m, idx, big), axis=0, keepdims=True)
    if is_nan is not None:
        first_nan = jnp.min(jnp.where(is_nan, idx, big), axis=0, keepdims=True)
        best = jnp.where(first_nan < big, first_nan, best)         # NaN wins

    o_ref[0] = best


# --------------------------------------------------------------------------
# Kernel 2: general streaming path. Input block (TR, TS, 128) with R leading;
# running (max, argidx) compare/select loop on the VPU; R split across an
# "arbitrary" grid axis with VMEM accumulators.
# --------------------------------------------------------------------------
def _argmax_stream_kernel(x_ref, o_ref, bv_ref, bi_ref, *, r_total, r_block):
    k = pl.program_id(1)

    @pl.when(k == 0)
    def _init():
        if jnp.issubdtype(bv_ref.dtype, jnp.floating):
            init = jnp.array(-jnp.inf, bv_ref.dtype)
        else:
            init = jnp.array(jnp.iinfo(bv_ref.dtype).min, bv_ref.dtype)
        bv_ref[...] = jnp.full(bv_ref.shape, init, bv_ref.dtype)
        bi_ref[...] = jnp.zeros(bi_ref.shape, jnp.int32)

    base = k * r_block
    guard = (r_total % r_block) != 0            # static: mask OOB tail rows

    def body(j, carry):
        bv, bi = carry
        v = x_ref[j]
        # ~(v <= bv): strict improvement (first occurrence wins on ties) and
        # NaN beats any non-NaN; (bv == bv): keep the first NaN once latched.
        take = jnp.logical_not(v <= bv) & (bv == bv)
        if guard:
            take = jnp.logical_and(take, base + j < r_total)
        return jnp.where(take, v, bv), jnp.where(take, base + j, bi)

    bv, bi = lax.fori_loop(0, r_block, body, (bv_ref[...], bi_ref[...]),
                           unroll=True if r_block <= 32 else 8)
    bv_ref[...] = bv
    bi_ref[...] = bi

    @pl.when(k == pl.num_programs(1) - 1)
    def _finalize():
        o_ref[...] = bi


# --------------------------------------------------------------------------
# Wrapper.
# --------------------------------------------------------------------------
@functools.partial(jax.jit, static_argnames=("axis", "input_block_budget"))
def argmax_pallas(x, axis, *, input_block_budget=None):
    if x.dtype == jnp.bool_:
        x = x.astype(jnp.int32)

    axis = axis % x.ndim
    r = int(x.shape[axis])
    out_shape = x.shape[:axis] + x.shape[axis + 1:]
    P = int(np.prod(x.shape[:axis], dtype=np.int64)) if axis > 0 else 1
    Q = int(np.prod(x.shape[axis + 1:], dtype=np.int64)) if axis < x.ndim - 1 else 1
    m = P * Q

    if r == 1:  # trivial reduction
        return jnp.zeros(out_shape, dtype=jnp.int32)

    itemsize = x.dtype.itemsize
    sub = _sublane_multiple(itemsize)
    budget, vmem_limit = _budgets(input_block_budget)

    # ---------------- Fast path: no XLA transpose needed. ----------------
    if Q >= 128 and Q % 128 == 0:
        tq_cap = min(budget // max(1, r * itemsize), budget // 16)
        tq = min(Q, (tq_cap // 128) * 128)
        if tq >= 128:
            if P * pl.cdiv(Q, tq) == 1 and Q >= 256:
                # guarantee >=2 parallel grid steps (v7x dual TensorCore)
                tq = ((-(-Q // 2) + 127) // 128) * 128
            grid_q = pl.cdiv(Q, tq)
            out3 = pl.pallas_call(
                _argmax_sublane_kernel,
                out_shape=jax.ShapeDtypeStruct((P, 1, Q), jnp.int32),
                grid=(P, grid_q),
                in_specs=[pl.BlockSpec((1, r, tq), lambda p, qi: (p, 0, qi))],
                out_specs=pl.BlockSpec((1, 1, tq), lambda p, qi: (p, 0, qi)),
                compiler_params=pltpu.CompilerParams(
                    dimension_semantics=("parallel", "parallel"),
                    vmem_limit_bytes=vmem_limit),
                cost_estimate=pl.CostEstimate(
                    flops=8 * r * m, transcendentals=0,
                    bytes_accessed=r * m * itemsize + m * 4),
            )(x.reshape(P, r, Q))
            return out3.reshape(out_shape)

    # -------- General path: R to the front, lane-dense (S, 128) slab. -----
    L = 128
    xr = jnp.moveaxis(x, axis, 0).reshape(r, m)
    m_pad = ((m + L - 1) // L) * L if m > 0 else L
    if m_pad != m:
        xr = jnp.pad(xr, ((0, 0), (0, m_pad - m)))
    s = m_pad // L
    xr = xr.reshape(r, s, L)

    # R tiling (R-split only when a (TR, sub, 128) block would not fit).
    max_tr = max(1, budget // (L * sub * itemsize))
    tr = r if r <= max_tr else max_tr
    grid_r = pl.cdiv(r, tr)

    # S tiling (bounded by both the input and the int32-output footprint).
    row_bytes = tr * L * itemsize
    ts_cap = min(budget // row_bytes, budget // (4 * L * 4))
    ts = min(s, max(1, ts_cap))
    if ts < s:
        ts = max(sub, (ts // sub) * sub)
    elif s > sub:
        half = -(-s // 2)
        ts2 = ((half + sub - 1) // sub) * sub
        if ts2 < s:
            ts = ts2   # >=2 parallel grid steps (v7x dual TensorCore)
    grid_s = pl.cdiv(s, ts)

    kernel = functools.partial(_argmax_stream_kernel, r_total=r, r_block=tr)
    out2 = pl.pallas_call(
        kernel,
        out_shape=jax.ShapeDtypeStruct((s, L), jnp.int32),
        grid=(grid_s, grid_r),
        in_specs=[pl.BlockSpec((tr, ts, L), lambda i, k: (k, i, 0))],
        out_specs=pl.BlockSpec((ts, L), lambda i, k: (i, 0)),
        scratch_shapes=[pltpu.VMEM((ts, L), x.dtype),
                        pltpu.VMEM((ts, L), jnp.int32)],
        compiler_params=pltpu.CompilerParams(
            dimension_semantics=("parallel", "arbitrary"),
            vmem_limit_bytes=vmem_limit),
        cost_estimate=pl.CostEstimate(
            flops=5 * r * m_pad, transcendentals=0,
            bytes_accessed=r * m_pad * itemsize + m_pad * 4),
    )(xr)
    return out2.reshape(-1)[:m].reshape(out_shape)


if __name__ == "__main__":
    key = jax.random.PRNGKey(0)
    # Small NCHW input consistent with the module's forward.
    x = jax.random.normal(key, (2, 4, 16, 16), dtype=jnp.float32)

    # Primary case: ONNX ArgMax over the channel/class axis (fast path).
    out = argmax_pallas(x, 1)
    jax.block_until_ready(out)
    ref = jnp.argmax(x, axis=1)
    assert out.shape == ref.shape, (out.shape, ref.shape)
    np.testing.assert_array_equal(np.asarray(out), np.asarray(ref))

    # Other axes exercise the fast (axis=0) and general (axis=2,3) paths.
    for ax in (0, 2, 3, -1):
        o = argmax_pallas(x, ax)
        jax.block_until_ready(o)
        np.testing.assert_array_equal(
            np.asarray(o), np.asarray(jnp.argmax(x, axis=ax)))

    # Ties: first occurrence wins.
    x_ties = jnp.zeros((2, 4, 16, 16), jnp.float32)
    np.testing.assert_array_equal(
        np.asarray(argmax_pallas(x_ties, 1)),
        np.asarray(jnp.argmax(x_ties, axis=1)))

    # NaN: index of the first NaN is returned (both paths).
    x_nan = x.at[0, 2, 3, :].set(jnp.nan)
    np.testing.assert_array_equal(
        np.asarray(argmax_pallas(x_nan, 1)),
        np.asarray(jnp.argmax(x_nan, axis=1)))
    x_nan2 = x.at[0, 1, :, 5].set(jnp.nan)
    np.testing.assert_array_equal(
        np.asarray(argmax_pallas(x_nan2, 3)),
        np.asarray(jnp.argmax(x_nan2, axis=3)))

    # Large-R accumulator path: a tiny synthetic block budget forces the
    # "arbitrary" R grid axis (with a non-dividing tail to exercise masking).
    xr_big = jax.random.normal(jax.random.PRNGKey(1), (66, 100), jnp.float32)
    o = argmax_pallas(xr_big, 0, input_block_budget=16 * 1024)
    jax.block_until_ready(o)
    np.testing.assert_array_equal(
        np.asarray(o), np.asarray(jnp.argmax(xr_big, axis=0)))

    print("KERNEL_OK")
</pallas_src>

<mosaic_0001>
module attributes {stable_mosaic.version = 11 : i64} {
  func.func @_argmax_sublane_kernel(%arg0: i32, %arg1: i32, %arg2: memref<1x4x256xf32, #tpu.memory_space<vmem>>, %arg3: memref<1x1x256xi32, #tpu.memory_space<vmem>>) attributes {dimension_semantics = [#tpu.dimension_semantics<parallel>, #tpu.dimension_semantics<parallel>], iteration_bounds = array<i64: 2, 1>, scalar_prefetch = 0 : i64, scratch_operands = 0 : i64, tpu.core_type = #tpu.core_type<tc>, window_params = [{transform_indices = @transform_0, window_bounds = array<i64: 1, 4, 256>}, {transform_indices = @transform_1, window_bounds = array<i64: 1, 1, 256>}]} {
    %c0 = arith.constant 0 : index
    %c0_0 = arith.constant 0 : index
    %c0_1 = arith.constant 0 : index
    %0 = vector.load %arg2[%c0, %c0_0, %c0_1] : memref<1x4x256xf32, #tpu.memory_space<vmem>>, vector<1x4x256xf32>
    %1 = vector.shape_cast %0 : vector<1x4x256xf32> to vector<4x256xf32>
    %2 = tpu.iota {dimensions = array<i32: 0>} : vector<4x256xi32>
    %3 = arith.cmpf one, %1, %1 : vector<4x256xf32>
    %cst = arith.constant 0xFF800000 : f32
    %4 = vector.broadcast %cst : f32 to vector<4x256xf32>
    %5 = arith.select %3, %4, %1 : vector<4x256xi1>, vector<4x256xf32>
    %cst_2 = arith.constant dense<0xFF800000> : vector<256xf32>
    %6 = vector.multi_reduction <maximumf>, %5, %cst_2 [0] : vector<4x256xf32> to vector<256xf32>
    %7 = vector.shape_cast %6 : vector<256xf32> to vector<1x256xf32>
    %8 = vector.broadcast %7 : vector<1x256xf32> to vector<4x256xf32>
    %9 = arith.cmpf oeq, %5, %8 : vector<4x256xf32>
    %c4_i32 = arith.constant 4 : i32
    %10 = vector.broadcast %c4_i32 : i32 to vector<4x256xi32>
    %11 = arith.select %9, %2, %10 : vector<4x256xi1>, vector<4x256xi32>
    %cst_3 = arith.constant dense<2147483647> : vector<256xi32>
    %12 = vector.multi_reduction <minsi>, %11, %cst_3 [0] : vector<4x256xi32> to vector<256xi32>
    %13 = vector.shape_cast %12 : vector<256xi32> to vector<1x256xi32>
    %c4_i32_4 = arith.constant 4 : i32
    %14 = vector.broadcast %c4_i32_4 : i32 to vector<4x256xi32>
    %15 = arith.select %3, %2, %14 : vector<4x256xi1>, vector<4x256xi32>
    %cst_5 = arith.constant dense<2147483647> : vector<256xi32>
    %16 = vector.multi_reduction <minsi>, %15, %cst_5 [0] : vector<4x256xi32> to vector<256xi32>
    %17 = vector.shape_cast %16 : vector<256xi32> to vector<1x256xi32>
    %c4_i32_6 = arith.constant 4 : i32
    %18 = vector.broadcast %c4_i32_6 : i32 to vector<1x256xi32>
    %19 = arith.cmpi slt, %17, %18 : vector<1x256xi32>
    %20 = arith.select %19, %17, %13 : vector<1x256xi1>, vector<1x256xi32>
    %c0_7 = arith.constant 0 : index
    %c0_8 = arith.constant 0 : index
    %c0_9 = arith.constant 0 : index
    %21 = vector.load %arg3[%c0_7, %c0_8, %c0_9] : memref<1x1x256xi32, #tpu.memory_space<vmem>>, vector<1x1x256xi32>
    %22 = vector.shape_cast %21 : vector<1x1x256xi32> to vector<1x256xi32>
    %23 = vector.shape_cast %20 : vector<1x256xi32> to vector<1x1x256xi32>
    tpu.vector_store %arg3[%c0_7, %c0_8, %c0_9], %23 {strides = array<i32>} : memref<1x1x256xi32, #tpu.memory_space<vmem>>, vector<1x1x256xi32>,
    return
  }
  func.func @transform_0(%arg0: i32, %arg1: i32) -> (i32, i32, i32) {
    %c0_i32 = arith.constant 0 : i32
    %c0_i32_0 = arith.constant 0 : i32
    return %arg0, %c0_i32, %arg1 : i32, i32, i32
  }
  func.func @transform_1(%arg0: i32, %arg1: i32) -> (i32, i32, i32) {
    %c0_i32 = arith.constant 0 : i32
    %c0_i32_0 = arith.constant 0 : i32
    return %arg0, %c0_i32, %arg1 : i32, i32, i32
  }
}

</mosaic_0001>

<llo_original>
// kernel: argmax_pallas.1
$region0: #{argmax_pallas.1}
  #allocation0 [shape = 'u32[]', space=smem, size = 0x4, offset = 0x4, fixed_abs, tag = 'smem constant byte address 0x4 - core index']
  #allocation1 [shape = 'u32[144,128]{1,0:T(1,128)}', space=vmem, size = 0x12000, scoped, tag = 'internal scratch']
  %s0 = inlined_call_operand.vmem [shape: f32[2,4,256], index: 0, kind: input, shape index: {}]
  %s1 = inlined_call_operand.vmem [shape: s32[2,1,256], index: 1, kind: output, shape index: {}]
  %s2 = sld [smem:[#allocation0]]
  $region37: #{argmax_pallas.1} parent=0
    _
  %s4 = ssub.s32 1, %s2
  %s5 = scalar_select 0, %s4, %s2
  loop: start=0, step=1, limit=4
  $region2: #{argmax_pallas.1} parent=0 // loop_pre_header
    _
  $region3: #{argmax_pallas.1} parent=0 // loop_header
    %s7 = sphi 0, %s11
    %p8 = scmp.ge.s32.totalorder %s7, 4
    %s14 = sphi 0, %s26
    %s15 = sphi 0, %s22
    %s16 = sphi 0, %s14
    %s17 = sphi 0, %s15
    %s18 = sphi 0, %s16
    %s19 = sphi 0, %s17
    %s31 = sphi 0, %s33
    %s34 = sphi 0, %s31
    %s35 = sphi 0, %s34
    %s51 = sphi 0, %s35
    %s59 = sphi 0, %s61
    %s62 = sphi 0, %s59
    %s63 = sphi 0, %s62
    %s79 = sphi 0, %s63
  $region4: #{argmax_pallas.1} parent=0 // loop_header_branch
    %10 = sbr.rel (%p8) target = $region8
  $region5: #{argmax_pallas.1} parent=0 // loop_body
    %s12 = ssub.s32 %s7, 1
    %s13 = ssub.s32 %s7, 2
    %s20 = sadd.s32 1, %s15
    %p21 = scmp.ge.s32.totalorder %s20, 1
    %s22 = scalar_select %p21, 0, %s20
    %s23 = sadd.s32 1, %s14
    %s24 = scalar_select %p21, %s23, %s14
    %p25 = scmp.ge.s32.totalorder %s24, 2
    %s26 = scalar_select %p25, 0, %s24
    %s27 = ssub.s32 %s14, %s26
    %s28 = ssub.s32 %s15, %s22
    %s29 = sor.u32 %s27, %s28
    %p30 = scmp.eq.s32.totalorder %s29, 0
    %s32 = sadd.s32 %s31, 1
    %s33 = scalar_select %p30, %s31, %s32
    %p36 = pneg %p30
    %p37 = scmp.eq.s32.totalorder %s7, 1
    %p38 = por %p36, %p37
    %p39 = scmp.ne.s32.totalorder %s31, %s34
    %p40 = scmp.eq.s32.totalorder %s7, 0
    %p41 = por %p39, %p40
    %p42 = scmp.ne.s32.totalorder %s31, %s34
    %p43 = scmp.eq.s32.totalorder %s12, 1
    %p44 = por %p42, %p43
    %p45 = scmp.ne.s32.totalorder %s34, %s35
    %p46 = scmp.eq.s32.totalorder %s12, 0
    %p47 = por %p45, %p46
    %p48 = scmp.ne.s32.totalorder %s34, %s35
    %p49 = scmp.eq.s32.totalorder %s13, 1
    %p50 = por %p48, %p49
    %p52 = scmp.ne.s32.totalorder %s35, %s51
    %p53 = scmp.eq.s32.totalorder %s13, 0
    %p54 = por %p52, %p53
    %s55 = ssub.s32 %s14, %s26
    %s56 = ssub.s32 %s15, %s22
    %s57 = sor.u32 %s55, %s56
    %p58 = scmp.eq.s32.totalorder %s57, 0
    %s60 = sadd.s32 %s59, 1
    %s61 = scalar_select %p58, %s59, %s60
    %p64 = pneg %p58
    %p65 = scmp.eq.s32.totalorder %s7, 1
    %p66 = por %p64, %p65
    %p67 = scmp.ne.s32.totalorder %s59, %s62
    %p68 = scmp.eq.s32.totalorder %s7, 0
    %p69 = por %p67, %p68
    %p70 = scmp.ne.s32.totalorder %s59, %s62
    %p71 = scmp.eq.s32.totalorder %s12, 1
    %p72 = por %p70, %p71
    %p73 = scmp.ne.s32.totalorder %s62, %s63
    %p74 = scmp.eq.s32.totalorder %s12, 0
    %p75 = por %p73, %p74
    %p76 = scmp.ne.s32.totalorder %s62, %s63
    %p77 = scmp.eq.s32.totalorder %s13, 1
    %p78 = por %p76, %p77
    %p80 = scmp.ne.s32.totalorder %s63, %s79
    %p81 = scmp.eq.s32.totalorder %s13, 0
    %p82 = por %p80, %p81
    %p83 = scmp.le.s32.totalorder 1, %s7
    %p84 = scmp.lt.s32.totalorder %s7, 3
    %p85 = pnand %p83, %p84
    %p86 = pneg %p85
    // Predicated region
    $region9: #{argmax_pallas.1} parent=5 // pred_check
      _
    $region10: #{argmax_pallas.1} parent=5 // pred_check_branch
      %88 = sbr.rel (%p85) target = $region12
    $region11: #{argmax_pallas.1} parent=5 // pred_region
      %s89 = ssub.s32 %s7, 1
    $region12: #{argmax_pallas.1} parent=5 // pred_fallthru
      _
    %p90 = scmp.lt.s32.totalorder %s7, 2
    // Predicated region
    $region13: #{argmax_pallas.1} parent=5 // pred_check
      %p91 = pneg %p90
    $region14: #{argmax_pallas.1} parent=5 // pred_check_branch
      %93 = sbr.rel (%p91) target = $region16
    $region15: #{argmax_pallas.1} parent=5 // pred_region
      // Predicated region
      $region17: #{argmax_pallas.1} parent=15 // pred_check
        %p94 = pneg %p41
      $region18: #{argmax_pallas.1} parent=15 // pred_check_branch
        %96 = sbr.rel (%p94) target = $region20
      $region19: #{argmax_pallas.1} parent=15 // pred_region
        %s97 = smul.u32 2, %s15
        %p98 = scmp.lt.s32.totalorder %s14, 1
        %s99 = scalar_select %p98, %s14, 1
        %p100 = scmp.lt.s32.totalorder %s97, 1
        %s101 = scalar_select %p100, %s97, 1
        %s102 = smul.addr %s99, 2
        %s103 = sadd.s32 %s101, %s102
        %s104 = smul.addr %s103, 4
        %s105 = scalar_lea.vmem %s0, %s104
        %s106 = smul.u32 2, %s15
      $region20: #{argmax_pallas.1} parent=15 // pred_fallthru
        _
    $region16: #{argmax_pallas.1} parent=5 // pred_fallthru
      _
    %p107 = scmp.le.s32.totalorder 1, %s7
    %p108 = scmp.lt.s32.totalorder %s7, 3
    %p109 = pnand %p107, %p108
    %p110 = pneg %p109
    // Predicated region
    $region21: #{argmax_pallas.1} parent=5 // pred_check
      _
    $region22: #{argmax_pallas.1} parent=5 // pred_check_branch
      %112 = sbr.rel (%p109) target = $region24
    $region23: #{argmax_pallas.1} parent=5 // pred_region
      %s113 = ssub.s32 %s7, 1
      %s114 = smul.u32 2, %s17
      %p115 = scmp.lt.s32.totalorder %s16, 1
      %s116 = scalar_select %p115, %s16, 1
      %p117 = scmp.lt.s32.totalorder %s114, 1
      %s118 = scalar_select %p117, %s114, 1
      %s119 = smul.addr %s116, 2
      %s120 = sadd.s32 %s118, %s119
      %s121 = smul.addr %s120, 4
      %s122 = scalar_lea.vmem %s0, %s121
      %p123 = pneg %p47
      %p124 = pneg %p44
      %p125 = pneg %p75
      %p126 = pneg %p72
      %s127 = smul.u32 2, %s17
      %p128 = scmp.lt.s32.totalorder %s16, 1
      %s129 = scalar_select %p128, %s16, 1
      %p130 = scmp.lt.s32.totalorder %s127, 1
      %s131 = scalar_select %p130, %s127, 1
      %s132 = smul.addr %s129, 2
      %s133 = sadd.s32 %s131, %s132
      %s134 = scalar_lea.vmem %s1, %s133
      %s135 = smul.u32 2, %s17
      %p136 = scmp.lt.s32.totalorder %s16, 1
      %s137 = scalar_select %p136, %s16, 1
      %p138 = scmp.lt.s32.totalorder %s135, 1
      %s139 = scalar_select %p138, %s135, 1
      %s140 = smul.addr %s137, 2
      %s141 = sadd.s32 %s139, %s140
      %s142 = smul.addr %s141, 4
      %s143 = scalar_lea.vmem %s0, %s142
      %s144 = smul.u32 2, %s17
      %s145 = smul.u32 2, %s17
      %p146 = scmp.lt.s32.totalorder %s16, 1
      %s147 = scalar_select %p146, %s16, 1
      %p148 = scmp.lt.s32.totalorder %s145, 1
      %s149 = scalar_select %p148, %s145, 1
      %s150 = smul.addr %s147, 2
      %s151 = sadd.s32 %s149, %s150
      %s152 = scalar_lea.vmem %s1, %s151
      %s153 = smul.u32 2, %s17
      %v154 = vld [vmem:[%s143] sm:$0xff]
      %v155 = vlaneseq
      %v156 = vshrl.u32 %v155, 7
      %vm157 = vcmp.ne.f32.partialorder %v154, %v154
      %v158 = vsel %vm157, -inf, %v154
      %v160 = vcombine.high %v158, %v158
      %vm162 = vcmask 1043456
      %v163 = vsel %vm162, %v158, -inf
      %v164 = vrot.slane %v163, 4
      %v165 = vmax.f32 %v163, %v164
      %v166 = vrot.slane %v165, 2
      %v167 = vmax.f32 %v165, %v166
      %v168 = vrot.slane %v167, 1
      %v169 = vmax.f32 %v167, %v168
      %v170 = vsel %vm162, %v160, -inf
      %v171 = vrot.slane %v170, 4
      %v172 = vmax.f32 %v170, %v171
      %v173 = vrot.slane %v172, 2
      %v174 = vmax.f32 %v172, %v173
      %v175 = vrot.slane %v174, 1
      %v176 = vmax.f32 %v174, %v175
      %v179 = vcombine.low %v169, %v176
      %vm181 = vcmp.eq.f32.partialorder %v158, %v179
      %v183 = vunpack.c.l.s4 839922192
      %v184 = vunpack.c.0.s8 %v183
      %v185 = vlaneseq
      %v186 = vshrl.u32 %v185, 7
      %v187 = vsub.s32 %v184, %v186
      %v188 = vrot.slane %v156, %v187
      %v189 = vsel %vm181, %v188, 4
      %v190 = vcombine.high %v189, %v189
      %v191 = vsel %vm162, %v189, 2147483647
      %v192 = vrot.slane %v191, 4
      %vm193 = vcmp.lt.s32.totalorder %v191, %v192
      %v194 = vsel %vm193, %v191, %v192
      %v195 = vrot.slane %v194, 2
      %vm196 = vcmp.lt.s32.totalorder %v194, %v195
      %v197 = vsel %vm196, %v194, %v195
      %v198 = vrot.slane %v197, 1
      %vm199 = vcmp.lt.s32.totalorder %v197, %v198
      %v200 = vsel %vm199, %v197, %v198
      %v201 = vsel %vm162, %v190, 2147483647
      %v202 = vrot.slane %v201, 4
      %vm203 = vcmp.lt.s32.totalorder %v201, %v202
      %v204 = vsel %vm203, %v201, %v202
      %v205 = vrot.slane %v204, 2
      %vm206 = vcmp.lt.s32.totalorder %v204, %v205
      %v207 = vsel %vm206, %v204, %v205
      %v208 = vrot.slane %v207, 1
      %vm209 = vcmp.lt.s32.totalorder %v207, %v208
      %v210 = vsel %vm209, %v207, %v208
      %v211 = vsel %vm157, %v188, 4
      %v212 = vcombine.high %v211, %v211
      %v213 = vsel %vm162, %v211, 2147483647
      %v214 = vrot.slane %v213, 4
      %vm215 = vcmp.lt.s32.totalorder %v213, %v214
      %v216 = vsel %vm215, %v213, %v214
      %v217 = vrot.slane %v216, 2
      %vm218 = vcmp.lt.s32.totalorder %v216, %v217
      %v219 = vsel %vm218, %v216, %v217
      %v220 = vrot.slane %v219, 1
      %vm221 = vcmp.lt.s32.totalorder %v219, %v220
      %v222 = vsel %vm221, %v219, %v220
      %v223 = vsel %vm162, %v212, 2147483647
      %v224 = vrot.slane %v223, 4
      %vm225 = vcmp.lt.s32.totalorder %v223, %v224
      %v226 = vsel %vm225, %v223, %v224
      %v227 = vrot.slane %v226, 2
      %vm228 = vcmp.lt.s32.totalorder %v226, %v227
      %v229 = vsel %vm228, %v226, %v227
      %v230 = vrot.slane %v229, 1
      %vm231 = vcmp.lt.s32.totalorder %v229, %v230
      %v232 = vsel %vm231, %v229, %v230
      %vm233 = vcmp.lt.s32.totalorder %v222, 4
      %vm234 = vcmp.lt.s32.totalorder %v232, 4
      %v235 = vsel %vm233, %v222, %v200
      %v236 = vsel %vm234, %v232, %v210
      %v237 = vcombine.low %v235, %v236
      %v239 = vunpack.c.l.s4 1966171168
      %v240 = vunpack.c.0.s8 %v239
      %v241 = vlaneseq
      %v242 = vshrl.u32 %v241, 7
      %v243 = vsub.s32 %v240, %v242
      %v244 = vrot.slane %v237, %v243
      %v246 = vunpack.c.l.s4 1966171168
      %v247 = vunpack.c.0.s8 %v246
      %v248 = vlaneseq
      %v249 = vshrl.u32 %v248, 7
      %v250 = vsub.s32 %v247, %v249
      %v251 = vrot.slane %v244, %v250
      %v252 = vlaneseq
      %vm253 = vcmp.ge.s32.totalorder %v252, 0
      %vm254 = vcmp.lt.s32.totalorder %v252, 256
      %vm255 = vmand %vm253, %vm254
      %256 = vst.msk [vmem:[%s152] sm:$0x3] %vm255, %v251
      %s257 = smul.u32 2, %s17
      %p258 = scmp.lt.s32.totalorder %s16, 1
      %s259 = scalar_select %p258, %s16, 1
      %p260 = scmp.lt.s32.totalorder %s257, 1
      %s261 = scalar_select %p260, %s257, 1
      %s262 = smul.addr %s259, 2
      %s263 = sadd.s32 %s261, %s262
      %s264 = scalar_lea.vmem %s1, %s263
      // Predicated region
      $region25: #{argmax_pallas.1} parent=23 // pred_check
        %p265 = pneg %p72
      $region26: #{argmax_pallas.1} parent=23 // pred_check_branch
        %267 = sbr.rel (%p265) target = $region28
      $region27: #{argmax_pallas.1} parent=23 // pred_region
        %s268 = smul.u32 2, %s17
      $region28: #{argmax_pallas.1} parent=23 // pred_fallthru
        _
    $region24: #{argmax_pallas.1} parent=5 // pred_fallthru
      _
    %p269 = scmp.le.s32.totalorder 2, %s7
    // Predicated region
    $region29: #{argmax_pallas.1} parent=5 // pred_check
      %p270 = pneg %p269
    $region30: #{argmax_pallas.1} parent=5 // pred_check_branch
      %272 = sbr.rel (%p270) target = $region32
    $region31: #{argmax_pallas.1} parent=5 // pred_region
      %s273 = ssub.s32 %s7, 2
      // Predicated region
      $region33: #{argmax_pallas.1} parent=31 // pred_check
        %p274 = pneg %p78
      $region34: #{argmax_pallas.1} parent=31 // pred_check_branch
        %276 = sbr.rel (%p274) target = $region36
      $region35: #{argmax_pallas.1} parent=31 // pred_region
        %s277 = smul.u32 2, %s19
        %p278 = scmp.lt.s32.totalorder %s18, 1
        %s279 = scalar_select %p278, %s18, 1
        %p280 = scmp.lt.s32.totalorder %s277, 1
        %s281 = scalar_select %p280, %s277, 1
        %s282 = smul.addr %s279, 2
        %s283 = sadd.s32 %s281, %s282
        %s284 = scalar_lea.vmem %s1, %s283
      $region36: #{argmax_pallas.1} parent=31 // pred_fallthru
        _
    $region32: #{argmax_pallas.1} parent=5 // pred_fallthru
      _
  $region6: #{argmax_pallas.1} parent=0 // loop_footer
    %s11 = sadd.s32 1, %s7
  $region7: #{argmax_pallas.1} parent=0 // loop_footer_branch
    %6 = sbr.rel target = $region3
  $region8: #{argmax_pallas.1} parent=0 // loop_exit
    _

</llo_original>
